<compile_context>
chip_gen: v6e
topology: v6e:2x2x1
jax: 0.10.0
libtpu: 0.0.40
codegen_flags: <defaults>
</compile_context>

<pallas_src>
import jax
import jax.numpy as jnp
from jax.experimental import pallas as pl
from jax.experimental.pallas import tpu as pltpu


def feature2face_kernel(fm_ref, ci_ref, w1fm_ref, w1ci_ref, b1_ref, w2_ref, b2_ref,
                        cat_ref, pred_ref):
    """One pixel tile (channel-major): concat via direct stores + tiny generator."""
    fm = fm_ref[...]                          # (C1, tp)  pixels on lane axis
    ci = ci_ref[...]                          # (C2, tp)
    c1 = fm.shape[0]

    # torch.cat([feature_map, cand_img], dim=1): two direct channel-major stores,
    # no in-kernel concatenate / repack.
    cat_ref[:c1, :] = fm.astype(cat_ref.dtype)
    cat_ref[c1:, :] = ci.astype(cat_ref.dtype)

    # 1x1-conv generator in transposed form (y = W^T @ x), first matmul split by
    # source so the concatenated activations never live in vregs.
    fmf = fm.astype(jnp.float32)
    cif = ci.astype(jnp.float32)
    h = (jnp.dot(w1fm_ref[...], fmf, preferred_element_type=jnp.float32)
         + jnp.dot(w1ci_ref[...], cif, preferred_element_type=jnp.float32)
         + b1_ref[...])                       # (Hid, tp); b1 is (Hid, 1) -> broadcasts
    h = jnp.where(h > 0, h, 0.2 * h)          # LeakyReLU(0.2)
    y = jnp.dot(w2_ref[...], h, preferred_element_type=jnp.float32) + b2_ref[...]
    pred_ref[...] = jnp.tanh(y).astype(pred_ref.dtype)


def feature2face_forward(feature_map, cand_img, params, *, tile_p=8192):
    """feature_map: (N, C1, H, W), cand_img: (N, C2, H, W)  -- PyTorch NCHW."""
    N, C1, H, W = feature_map.shape
    C2 = cand_img.shape[1]
    Cin = C1 + C2
    HW = H * W

    w1t, b1, w2t, b2 = params                 # (Hid, Cin), (Hid, 1), (Cout, Hid), (Cout, 1)
    Hid = w1t.shape[0]
    Cout = w2t.shape[0]

    # NCHW -> (N, C, H*W): pure reshape, no transpose / extra HBM pass.
    fm3d = feature_map.reshape(N, C1, HW)
    ci3d = cand_img.reshape(N, C2, HW)

    # Big pixel tiles (lane-aligned) to amortize per-grid-step overhead; pad the
    # pixel axis instead of asserting divisibility (padded tail is sliced off).
    if HW <= tile_p:
        tp = HW
    else:
        tp = max(128, (tile_p // 128) * 128)
    hw_pad = -(-HW // tp) * tp
    if hw_pad != HW:
        pad = ((0, 0), (0, 0), (0, hw_pad - HW))
        fm3d = jnp.pad(fm3d, pad)
        ci3d = jnp.pad(ci3d, pad)
    n_tiles = hw_pad // tp

    # Split w1 by input source (static, done once at trace time).
    w1t_fm = w1t[:, :C1]
    w1t_ci = w1t[:, C1:]

    dt_size = jnp.dtype(feature_map.dtype).itemsize
    cost = pl.CostEstimate(
        flops=2 * N * HW * (Cin * Hid + Hid * Cout),
        transcendentals=N * HW * Cout,
        bytes_accessed=N * HW * (C1 + C2 + Cin + Cout) * dt_size,
    )

    cat3d, pred3d = pl.pallas_call(
        feature2face_kernel,
        out_shape=(
            jax.ShapeDtypeStruct((N, Cin, hw_pad), feature_map.dtype),
            jax.ShapeDtypeStruct((N, Cout, hw_pad), feature_map.dtype),
        ),
        grid_spec=pltpu.PrefetchScalarGridSpec(
            num_scalar_prefetch=0,
            grid=(N, n_tiles),
            in_specs=[
                pl.BlockSpec((None, C1, tp), lambda n, p: (n, 0, p)),   # feature_map tile
                pl.BlockSpec((None, C2, tp), lambda n, p: (n, 0, p)),   # cand_img tile
                pl.BlockSpec((Hid, C1), lambda n, p: (0, 0)),           # w1^T (fm part)
                pl.BlockSpec((Hid, C2), lambda n, p: (0, 0)),           # w1^T (ci part)
                pl.BlockSpec((Hid, 1), lambda n, p: (0, 0)),            # b1
                pl.BlockSpec((Cout, Hid), lambda n, p: (0, 0)),         # w2^T
                pl.BlockSpec((Cout, 1), lambda n, p: (0, 0)),           # b2
            ],
            out_specs=(
                pl.BlockSpec((None, Cin, tp), lambda n, p: (n, 0, p)),  # input_feature_maps
                pl.BlockSpec((None, Cout, tp), lambda n, p: (n, 0, p)), # fake_pred
            ),
        ),
        compiler_params=pltpu.CompilerParams(
            dimension_semantics=("parallel", "parallel")),
        cost_estimate=cost,
    )(fm3d, ci3d, w1t_fm, w1t_ci, b1, w2t, b2)

    if hw_pad != HW:
        cat3d = cat3d[:, :, :HW]
        pred3d = pred3d[:, :, :HW]

    # Already in NCHW channel order; only reshape back.
    input_feature_maps = cat3d.reshape(N, Cin, H, W)
    fake_pred = pred3d.reshape(N, Cout, H, W)
    return input_feature_maps, fake_pred


def init_ffg_params(key, c_in, hidden, c_out, dtype=jnp.float32):
    """Deterministic synthetic generator params, stored transposed (channel-major)."""
    k1, k2 = jax.random.split(key)
    w1t = jax.random.normal(k1, (hidden, c_in), dtype) * 0.1   # (Hid, Cin)
    b1 = jnp.zeros((hidden, 1), dtype)
    w2t = jax.random.normal(k2, (c_out, hidden), dtype) * 0.1  # (Cout, Hid)
    b2 = jnp.zeros((c_out, 1), dtype)
    return w1t, b1, w2t, b2


if __name__ == "__main__":
    key = jax.random.PRNGKey(0)
    k_fm, k_ci, k_p = jax.random.split(key, 3)

    # Small shapes consistent with the module: feature maps + candidate image (NCHW).
    N, C1, C2, H, W = 2, 4, 3, 16, 16
    HIDDEN, C_OUT = 32, 3

    feature_map = jax.random.normal(k_fm, (N, C1, H, W), jnp.float32)
    cand_img = jax.random.normal(k_ci, (N, C2, H, W), jnp.float32)
    params = init_ffg_params(k_p, C1 + C2, HIDDEN, C_OUT)

    input_feature_maps, fake_pred = feature2face_forward(feature_map, cand_img, params)
    jax.block_until_ready((input_feature_maps, fake_pred))

    # Sanity checks vs. plain JAX reference.
    w1t, b1, w2t, b2 = params
    ref_cat = jnp.concatenate([feature_map, cand_img], axis=1)
    assert input_feature_maps.shape == (N, C1 + C2, H, W)
    assert fake_pred.shape == (N, C_OUT, H, W)
    assert jnp.allclose(input_feature_maps, ref_cat, atol=1e-6)

    xf = ref_cat.reshape(N, C1 + C2, H * W).astype(jnp.float32)
    h_ref = jnp.einsum('hc,ncp->nhp', w1t, xf) + b1[None]
    h_ref = jnp.where(h_ref > 0, h_ref, 0.2 * h_ref)
    y_ref = jnp.einsum('oh,nhp->nop', w2t, h_ref) + b2[None]
    ref_pred = jnp.tanh(y_ref).reshape(N, C_OUT, H, W).astype(feature_map.dtype)
    assert jnp.allclose(fake_pred, ref_pred, atol=1e-5)

    print("KERNEL_OK")
</pallas_src>

<mosaic_0001>
module attributes {stable_mosaic.version = 11 : i64} {
  func.func @feature2face_kernel(%arg0: i32, %arg1: i32, %arg2: memref<1x4x256xf32, #tpu.memory_space<vmem>>, %arg3: memref<1x3x256xf32, #tpu.memory_space<vmem>>, %arg4: memref<32x4xf32, #tpu.memory_space<vmem>>, %arg5: memref<32x3xf32, #tpu.memory_space<vmem>>, %arg6: memref<32x1xf32, #tpu.memory_space<vmem>>, %arg7: memref<3x32xf32, #tpu.memory_space<vmem>>, %arg8: memref<3x1xf32, #tpu.memory_space<vmem>>, %arg9: memref<1x7x256xf32, #tpu.memory_space<vmem>>, %arg10: memref<1x3x256xf32, #tpu.memory_space<vmem>>) attributes {dimension_semantics = [#tpu.dimension_semantics<parallel>, #tpu.dimension_semantics<parallel>], iteration_bounds = array<i64: 2, 1>, scalar_prefetch = 0 : i64, scratch_operands = 0 : i64, tpu.core_type = #tpu.core_type<tc>, window_params = [{transform_indices = @transform_0, window_bounds = array<i64: 1, 4, 256>}, {transform_indices = @transform_1, window_bounds = array<i64: 1, 3, 256>}, {pipeline_mode = #tpu.pipeline_mode<synchronous>, transform_indices = @transform_2, window_bounds = array<i64: 32, 4>}, {pipeline_mode = #tpu.pipeline_mode<synchronous>, transform_indices = @transform_3, window_bounds = array<i64: 32, 3>}, {pipeline_mode = #tpu.pipeline_mode<synchronous>, transform_indices = @transform_4, window_bounds = array<i64: 32, 1>}, {pipeline_mode = #tpu.pipeline_mode<synchronous>, transform_indices = @transform_5, window_bounds = array<i64: 3, 32>}, {pipeline_mode = #tpu.pipeline_mode<synchronous>, transform_indices = @transform_6, window_bounds = array<i64: 3, 1>}, {transform_indices = @transform_7, window_bounds = array<i64: 1, 7, 256>}, {transform_indices = @transform_8, window_bounds = array<i64: 1, 3, 256>}]} {
    %c0 = arith.constant 0 : index
    %c0_0 = arith.constant 0 : index
    %c0_1 = arith.constant 0 : index
    %0 = vector.load %arg2[%c0, %c0_0, %c0_1] : memref<1x4x256xf32, #tpu.memory_space<vmem>>, vector<1x4x256xf32>
    %1 = vector.shape_cast %0 : vector<1x4x256xf32> to vector<4x256xf32>
    %c0_2 = arith.constant 0 : index
    %c0_3 = arith.constant 0 : index
    %c0_4 = arith.constant 0 : index
    %2 = vector.load %arg3[%c0_2, %c0_3, %c0_4] : memref<1x3x256xf32, #tpu.memory_space<vmem>>, vector<1x3x256xf32>
    %3 = vector.shape_cast %2 : vector<1x3x256xf32> to vector<3x256xf32>
    %c0_5 = arith.constant 0 : index
    %c0_6 = arith.constant 0 : index
    %c0_7 = arith.constant 0 : index
    %4 = vector.load %arg9[%c0_5, %c0_6, %c0_7] : memref<1x7x256xf32, #tpu.memory_space<vmem>>, vector<1x4x256xf32>
    %5 = vector.shape_cast %4 : vector<1x4x256xf32> to vector<4x256xf32>
    %6 = vector.shape_cast %1 : vector<4x256xf32> to vector<1x4x256xf32>
    tpu.vector_store %arg9[%c0_5, %c0_6, %c0_7], %6 {strides = array<i32>} : memref<1x7x256xf32, #tpu.memory_space<vmem>>, vector<1x4x256xf32>,
    %c0_8 = arith.constant 0 : index
    %c4 = arith.constant 4 : index
    %c0_9 = arith.constant 0 : index
    %7 = vector.load %arg9[%c0_8, %c4, %c0_9] : memref<1x7x256xf32, #tpu.memory_space<vmem>>, vector<1x3x256xf32>
    %8 = vector.shape_cast %7 : vector<1x3x256xf32> to vector<3x256xf32>
    %9 = vector.shape_cast %3 : vector<3x256xf32> to vector<1x3x256xf32>
    tpu.vector_store %arg9[%c0_8, %c4, %c0_9], %9 {strides = array<i32>} : memref<1x7x256xf32, #tpu.memory_space<vmem>>, vector<1x3x256xf32>,
    %c0_10 = arith.constant 0 : index
    %c0_11 = arith.constant 0 : index
    %10 = vector.load %arg4[%c0_10, %c0_11] : memref<32x4xf32, #tpu.memory_space<vmem>>, vector<32x4xf32>
    %cst = arith.constant dense<0.000000e+00> : vector<32x256xf32>
    %11 = tpu.matmul %10, %1, %cst {dimension_numbers = #tpu.dot_dimension_numbers<[1], [0], [0], [1], [0, 0, 1, 1], [], []>} : vector<32x4xf32>, vector<4x256xf32>, vector<32x256xf32> -> vector<32x256xf32>
    %c0_12 = arith.constant 0 : index
    %c0_13 = arith.constant 0 : index
    %12 = vector.load %arg5[%c0_12, %c0_13] : memref<32x3xf32, #tpu.memory_space<vmem>>, vector<32x3xf32>
    %cst_14 = arith.constant dense<0.000000e+00> : vector<32x256xf32>
    %13 = tpu.matmul %12, %3, %cst_14 {dimension_numbers = #tpu.dot_dimension_numbers<[1], [0], [0], [1], [0, 0, 1, 1], [], []>} : vector<32x3xf32>, vector<3x256xf32>, vector<32x256xf32> -> vector<32x256xf32>
    %14 = arith.addf %11, %13 : vector<32x256xf32>
    %c0_15 = arith.constant 0 : index
    %c0_16 = arith.constant 0 : index
    %15 = vector.load %arg6[%c0_15, %c0_16] : memref<32x1xf32, #tpu.memory_space<vmem>>, vector<32x1xf32>
    %16 = vector.broadcast %15 : vector<32x1xf32> to vector<32x256xf32>
    %17 = arith.addf %14, %16 : vector<32x256xf32>
    %cst_17 = arith.constant 0.000000e+00 : f32
    %18 = vector.broadcast %cst_17 : f32 to vector<32x256xf32>
    %19 = arith.cmpf ogt, %17, %18 : vector<32x256xf32>
    %cst_18 = arith.constant 2.000000e-01 : f32
    %20 = vector.broadcast %cst_18 : f32 to vector<32x256xf32>
    %21 = arith.mulf %20, %17 : vector<32x256xf32>
    %22 = arith.select %19, %17, %21 : vector<32x256xi1>, vector<32x256xf32>
    %c0_19 = arith.constant 0 : index
    %c0_20 = arith.constant 0 : index
    %23 = vector.load %arg7[%c0_19, %c0_20] : memref<3x32xf32, #tpu.memory_space<vmem>>, vector<3x32xf32>
    %cst_21 = arith.constant dense<0.000000e+00> : vector<3x256xf32>
    %24 = tpu.matmul %23, %22, %cst_21 {dimension_numbers = #tpu.dot_dimension_numbers<[1], [0], [0], [1], [0, 0, 1, 1], [], []>} : vector<3x32xf32>, vector<32x256xf32>, vector<3x256xf32> -> vector<3x256xf32>
    %c0_22 = arith.constant 0 : index
    %c0_23 = arith.constant 0 : index
    %25 = vector.load %arg8[%c0_22, %c0_23] : memref<3x1xf32, #tpu.memory_space<vmem>>, vector<3x1xf32>
    %26 = vector.broadcast %25 : vector<3x1xf32> to vector<3x256xf32>
    %27 = arith.addf %24, %26 : vector<3x256xf32>
    %28 = math.tanh %27 : vector<3x256xf32>
    %c0_24 = arith.constant 0 : index
    %c0_25 = arith.constant 0 : index
    %c0_26 = arith.constant 0 : index
    %29 = vector.load %arg10[%c0_24, %c0_25, %c0_26] : memref<1x3x256xf32, #tpu.memory_space<vmem>>, vector<1x3x256xf32>
    %30 = vector.shape_cast %29 : vector<1x3x256xf32> to vector<3x256xf32>
    %31 = vector.shape_cast %28 : vector<3x256xf32> to vector<1x3x256xf32>
    tpu.vector_store %arg10[%c0_24, %c0_25, %c0_26], %31 {strides = array<i32>} : memref<1x3x256xf32, #tpu.memory_space<vmem>>, vector<1x3x256xf32>,
    return
  }
  func.func @transform_0(%arg0: i32, %arg1: i32) -> (i32, i32, i32) {
    %c0_i32 = arith.constant 0 : i32
    %c0_i32_0 = arith.constant 0 : i32
    return %arg0, %c0_i32, %arg1 : i32, i32, i32
  }
  func.func @transform_1(%arg0: i32, %arg1: i32) -> (i32, i32, i32) {
    %c0_i32 = arith.constant 0 : i32
    %c0_i32_0 = arith.constant 0 : i32
    return %arg0, %c0_i32, %arg1 : i32, i32, i32
  }
  func.func @transform_2(%arg0: i32, %arg1: i32) -> (i32, i32) {
    %c0_i32 = arith.constant 0 : i32
    %c0_i32_0 = arith.constant 0 : i32
    %c0_i32_1 = arith.constant 0 : i32
    return %c0_i32, %c0_i32_0 : i32, i32
  }
  func.func @transform_3(%arg0: i32, %arg1: i32) -> (i32, i32) {
    %c0_i32 = arith.constant 0 : i32
    %c0_i32_0 = arith.constant 0 : i32
    %c0_i32_1 = arith.constant 0 : i32
    return %c0_i32, %c0_i32_0 : i32, i32
  }
  func.func @transform_4(%arg0: i32, %arg1: i32) -> (i32, i32) {
    %c0_i32 = arith.constant 0 : i32
    %c0_i32_0 = arith.constant 0 : i32
    %c0_i32_1 = arith.constant 0 : i32
    return %c0_i32, %c0_i32_0 : i32, i32
  }
  func.func @transform_5(%arg0: i32, %arg1: i32) -> (i32, i32) {
    %c0_i32 = arith.constant 0 : i32
    %c0_i32_0 = arith.constant 0 : i32
    %c0_i32_1 = arith.constant 0 : i32
    return %c0_i32, %c0_i32_0 : i32, i32
  }
  func.func @transform_6(%arg0: i32, %arg1: i32) -> (i32, i32) {
    %c0_i32 = arith.constant 0 : i32
    %c0_i32_0 = arith.constant 0 : i32
    %c0_i32_1 = arith.constant 0 : i32
    return %c0_i32, %c0_i32_0 : i32, i32
  }
  func.func @transform_7(%arg0: i32, %arg1: i32) -> (i32, i32, i32) {
    %c0_i32 = arith.constant 0 : i32
    %c0_i32_0 = arith.constant 0 : i32
    return %arg0, %c0_i32, %arg1 : i32, i32, i32
  }
  func.func @transform_8(%arg0: i32, %arg1: i32) -> (i32, i32, i32) {
    %c0_i32 = arith.constant 0 : i32
    %c0_i32_0 = arith.constant 0 : i32
    return %arg0, %c0_i32, %arg1 : i32, i32, i32
  }
}

</mosaic_0001>

<llo_original>
// kernel: tpu_custom_call.1
$region0: #{tpu_custom_call.1}
  #allocation0 [shape = 'u32[]', space=smem, size = 0x4, offset = 0x4, fixed_abs, tag = 'smem constant byte address 0x4 - core index']
  #allocation1 [shape = 'u32[144,128]{1,0:T(1,128)}', space=vmem, size = 0x12000, scoped, tag = 'internal scratch']
  %s0 = inlined_call_operand.vmem [shape: f32[2,4,256], index: 0, kind: input, shape index: {}]
  %s1 = inlined_call_operand.vmem [shape: f32[2,3,256], index: 1, kind: input, shape index: {}]
  %s2 = inlined_call_operand.vmem [shape: f32[32,4], index: 2, kind: input, shape index: {}]
  %s3 = inlined_call_operand.vmem [shape: f32[32,3], index: 3, kind: input, shape index: {}]
  %s4 = inlined_call_operand.vmem [shape: f32[32,1], index: 4, kind: input, shape index: {}]
  %s5 = inlined_call_operand.vmem [shape: f32[3,32], index: 5, kind: input, shape index: {}]
  %s6 = inlined_call_operand.vmem [shape: f32[3,1], index: 6, kind: input, shape index: {}]
  %s7 = inlined_call_operand.vmem [shape: f32[2,7,256], index: 7, kind: output, shape index: {0}]
  %s8 = inlined_call_operand.vmem [shape: f32[2,3,256], index: 8, kind: output, shape index: {1}]
  %9 = xla_tuple %s7, %s8
  %s10 = sld [smem:[#allocation0]]
  $region69: #{tpu_custom_call.1} parent=0
    _
  %s12 = ssub.s32 1, %s10
  %s13 = scalar_select 0, %s12, %s10
  loop: start=0, step=1, limit=4
  $region2: #{tpu_custom_call.1} parent=0 // loop_pre_header
    _
  $region3: #{tpu_custom_call.1} parent=0 // loop_header
    %s15 = sphi 0, %s19
    %p16 = scmp.ge.s32.totalorder %s15, 4
    %s22 = sphi 0, %s34
    %s23 = sphi 0, %s30
    %s24 = sphi 0, %s22
    %s25 = sphi 0, %s23
    %s26 = sphi 0, %s24
    %s27 = sphi 0, %s25
    %s39 = sphi 0, %s41
    %s42 = sphi 0, %s39
    %s43 = sphi 0, %s42
    %s59 = sphi 0, %s43
    %s67 = sphi 0, %s69
    %s70 = sphi 0, %s67
    %s71 = sphi 0, %s70
    %s87 = sphi 0, %s71
    %s91 = sphi 0, %s91
    %s93 = sphi 0, %s91
    %s94 = sphi 0, %s93
    %s108 = sphi 0, %s94
    %s112 = sphi 0, %s112
    %s114 = sphi 0, %s112
    %s115 = sphi 0, %s114
    %s129 = sphi 0, %s115
    %s133 = sphi 0, %s133
    %s135 = sphi 0, %s133
    %s136 = sphi 0, %s135
    %s150 = sphi 0, %s136
    %s154 = sphi 0, %s154
    %s156 = sphi 0, %s154
    %s157 = sphi 0, %s156
    %s171 = sphi 0, %s157
    %s175 = sphi 0, %s175
    %s177 = sphi 0, %s175
    %s178 = sphi 0, %s177
    %s192 = sphi 0, %s178
    %s200 = sphi 0, %s202
    %s203 = sphi 0, %s200
    %s204 = sphi 0, %s203
    %s220 = sphi 0, %s204
    %s228 = sphi 0, %s230
    %s231 = sphi 0, %s228
    %s232 = sphi 0, %s231
    %s248 = sphi 0, %s232
  $region4: #{tpu_custom_call.1} parent=0 // loop_header_branch
    %18 = sbr.rel (%p16) target = $region8
  $region5: #{tpu_custom_call.1} parent=0 // loop_body
    %s20 = ssub.s32 %s15, 1
    %s21 = ssub.s32 %s15, 2
    %s28 = sadd.s32 1, %s23
    %p29 = scmp.ge.s32.totalorder %s28, 1
    %s30 = scalar_select %p29, 0, %s28
    %s31 = sadd.s32 1, %s22
    %s32 = scalar_select %p29, %s31, %s22
    %p33 = scmp.ge.s32.totalorder %s32, 2
    %s34 = scalar_select %p33, 0, %s32
    %s35 = ssub.s32 %s22, %s34
    %s36 = ssub.s32 %s23, %s30
    %s37 = sor.u32 %s35, %s36
    %p38 = scmp.eq.s32.totalorder %s37, 0
    %s40 = sadd.s32 %s39, 1
    %s41 = scalar_select %p38, %s39, %s40
    %p44 = pneg %p38
    %p45 = scmp.eq.s32.totalorder %s15, 1
    %p46 = por %p44, %p45
    %p47 = scmp.ne.s32.totalorder %s39, %s42
    %p48 = scmp.eq.s32.totalorder %s15, 0
    %p49 = por %p47, %p48
    %p50 = scmp.ne.s32.totalorder %s39, %s42
    %p51 = scmp.eq.s32.totalorder %s20, 1
    %p52 = por %p50, %p51
    %p53 = scmp.ne.s32.totalorder %s42, %s43
    %p54 = scmp.eq.s32.totalorder %s20, 0
    %p55 = por %p53, %p54
    %p56 = scmp.ne.s32.totalorder %s42, %s43
    %p57 = scmp.eq.s32.totalorder %s21, 1
    %p58 = por %p56, %p57
    %p60 = scmp.ne.s32.totalorder %s43, %s59
    %p61 = scmp.eq.s32.totalorder %s21, 0
    %p62 = por %p60, %p61
    %s63 = ssub.s32 %s22, %s34
    %s64 = ssub.s32 %s23, %s30
    %s65 = sor.u32 %s63, %s64
    %p66 = scmp.eq.s32.totalorder %s65, 0
    %s68 = sadd.s32 %s67, 1
    %s69 = scalar_select %p66, %s67, %s68
    %p72 = pneg %p66
    %p73 = scmp.eq.s32.totalorder %s15, 1
    %p74 = por %p72, %p73
    %p75 = scmp.ne.s32.totalorder %s67, %s70
    %p76 = scmp.eq.s32.totalorder %s15, 0
    %p77 = por %p75, %p76
    %p78 = scmp.ne.s32.totalorder %s67, %s70
    %p79 = scmp.eq.s32.totalorder %s20, 1
    %p80 = por %p78, %p79
    %p81 = scmp.ne.s32.totalorder %s70, %s71
    %p82 = scmp.eq.s32.totalorder %s20, 0
    %p83 = por %p81, %p82
    %p84 = scmp.ne.s32.totalorder %s70, %s71
    %p85 = scmp.eq.s32.totalorder %s21, 1
    %p86 = por %p84, %p85
    %p88 = scmp.ne.s32.totalorder %s71, %s87
    %p89 = scmp.eq.s32.totalorder %s21, 0
    %p90 = por %p88, %p89
    %s92 = sadd.s32 %s91, 1
    %p95 = scmp.eq.s32.totalorder %s15, 1
    %p96 = scmp.ne.s32.totalorder %s91, %s93
    %p97 = scmp.eq.s32.totalorder %s15, 0
    %p98 = por %p96, %p97
    %p99 = scmp.ne.s32.totalorder %s91, %s93
    %p100 = scmp.eq.s32.totalorder %s20, 1
    %p101 = por %p99, %p100
    %p102 = scmp.ne.s32.totalorder %s93, %s94
    %p103 = scmp.eq.s32.totalorder %s20, 0
    %p104 = por %p102, %p103
    %p105 = scmp.ne.s32.totalorder %s93, %s94
    %p106 = scmp.eq.s32.totalorder %s21, 1
    %p107 = por %p105, %p106
    %p109 = scmp.ne.s32.totalorder %s94, %s108
    %p110 = scmp.eq.s32.totalorder %s21, 0
    %p111 = por %p109, %p110
    %s113 = sadd.s32 %s112, 1
    %p116 = scmp.eq.s32.totalorder %s15, 1
    %p117 = scmp.ne.s32.totalorder %s112, %s114
    %p118 = scmp.eq.s32.totalorder %s15, 0
    %p119 = por %p117, %p118
    %p120 = scmp.ne.s32.totalorder %s112, %s114
    %p121 = scmp.eq.s32.totalorder %s20, 1
    %p122 = por %p120, %p121
    %p123 = scmp.ne.s32.totalorder %s114, %s115
    %p124 = scmp.eq.s32.totalorder %s20, 0
    %p125 = por %p123, %p124
    %p126 = scmp.ne.s32.totalorder %s114, %s115
    %p127 = scmp.eq.s32.totalorder %s21, 1
    %p128 = por %p126, %p127
    %p130 = scmp.ne.s32.totalorder %s115, %s129
    %p131 = scmp.eq.s32.totalorder %s21, 0
    %p132 = por %p130, %p131
    %s134 = sadd.s32 %s133, 1
    %p137 = scmp.eq.s32.totalorder %s15, 1
    %p138 = scmp.ne.s32.totalorder %s133, %s135
    %p139 = scmp.eq.s32.totalorder %s15, 0
    %p140 = por %p138, %p139
    %p141 = scmp.ne.s32.totalorder %s133, %s135
    %p142 = scmp.eq.s32.totalorder %s20, 1
    %p143 = por %p141, %p142
    %p144 = scmp.ne.s32.totalorder %s135, %s136
    %p145 = scmp.eq.s32.totalorder %s20, 0
    %p146 = por %p144, %p145
    %p147 = scmp.ne.s32.totalorder %s135, %s136
    %p148 = scmp.eq.s32.totalorder %s21, 1
    %p149 = por %p147, %p148
    %p151 = scmp.ne.s32.totalorder %s136, %s150
    %p152 = scmp.eq.s32.totalorder %s21, 0
    %p153 = por %p151, %p152
    %s155 = sadd.s32 %s154, 1
    %p158 = scmp.eq.s32.totalorder %s15, 1
    %p159 = scmp.ne.s32.totalorder %s154, %s156
    %p160 = scmp.eq.s32.totalorder %s15, 0
    %p161 = por %p159, %p160
    %p162 = scmp.ne.s32.totalorder %s154, %s156
    %p163 = scmp.eq.s32.totalorder %s20, 1
    %p164 = por %p162, %p163
    %p165 = scmp.ne.s32.totalorder %s156, %s157
    %p166 = scmp.eq.s32.totalorder %s20, 0
    %p167 = por %p165, %p166
    %p168 = scmp.ne.s32.totalorder %s156, %s157
    %p169 = scmp.eq.s32.totalorder %s21, 1
    %p170 = por %p168, %p169
    %p172 = scmp.ne.s32.totalorder %s157, %s171
    %p173 = scmp.eq.s32.totalorder %s21, 0
    %p174 = por %p172, %p173
    %s176 = sadd.s32 %s175, 1
    %p179 = scmp.eq.s32.totalorder %s15, 1
    %p180 = scmp.ne.s32.totalorder %s175, %s177
    %p181 = scmp.eq.s32.totalorder %s15, 0
    %p182 = por %p180, %p181
    %p183 = scmp.ne.s32.totalorder %s175, %s177
    %p184 = scmp.eq.s32.totalorder %s20, 1
    %p185 = por %p183, %p184
    %p186 = scmp.ne.s32.totalorder %s177, %s178
    %p187 = scmp.eq.s32.totalorder %s20, 0
    %p188 = por %p186, %p187
    %p189 = scmp.ne.s32.totalorder %s177, %s178
    %p190 = scmp.eq.s32.totalorder %s21, 1
    %p191 = por %p189, %p190
    %p193 = scmp.ne.s32.totalorder %s178, %s192
    %p194 = scmp.eq.s32.totalorder %s21, 0
    %p195 = por %p193, %p194
    %s196 = ssub.s32 %s22, %s34
    %s197 = ssub.s32 %s23, %s30
    %s198 = sor.u32 %s196, %s197
    %p199 = scmp.eq.s32.totalorder %s198, 0
    %s201 = sadd.s32 %s200, 1
    %s202 = scalar_select %p199, %s200, %s201
    %p205 = pneg %p199
    %p206 = scmp.eq.s32.totalorder %s15, 1
    %p207 = por %p205, %p206
    %p208 = scmp.ne.s32.totalorder %s200, %s203
    %p209 = scmp.eq.s32.totalorder %s15, 0
    %p210 = por %p208, %p209
    %p211 = scmp.ne.s32.totalorder %s200, %s203
    %p212 = scmp.eq.s32.totalorder %s20, 1
    %p213 = por %p211, %p212
    %p214 = scmp.ne.s32.totalorder %s203, %s204
    %p215 = scmp.eq.s32.totalorder %s20, 0
    %p216 = por %p214, %p215
    %p217 = scmp.ne.s32.totalorder %s203, %s204
    %p218 = scmp.eq.s32.totalorder %s21, 1
    %p219 = por %p217, %p218
    %p221 = scmp.ne.s32.totalorder %s204, %s220
    %p222 = scmp.eq.s32.totalorder %s21, 0
    %p223 = por %p221, %p222
    %s224 = ssub.s32 %s22, %s34
    %s225 = ssub.s32 %s23, %s30
    %s226 = sor.u32 %s224, %s225
    %p227 = scmp.eq.s32.totalorder %s226, 0
    %s229 = sadd.s32 %s228, 1
    %s230 = scalar_select %p227, %s228, %s229
    %p233 = pneg %p227
    %p234 = scmp.eq.s32.totalorder %s15, 1
    %p235 = por %p233, %p234
    %p236 = scmp.ne.s32.totalorder %s228, %s231
    %p237 = scmp.eq.s32.totalorder %s15, 0
    %p238 = por %p236, %p237
    %p239 = scmp.ne.s32.totalorder %s228, %s231
    %p240 = scmp.eq.s32.totalorder %s20, 1
    %p241 = por %p239, %p240
    %p242 = scmp.ne.s32.totalorder %s231, %s232
    %p243 = scmp.eq.s32.totalorder %s20, 0
    %p244 = por %p242, %p243
    %p245 = scmp.ne.s32.totalorder %s231, %s232
    %p246 = scmp.eq.s32.totalorder %s21, 1
    %p247 = por %p245, %p246
    %p249 = scmp.ne.s32.totalorder %s232, %s248
    %p250 = scmp.eq.s32.totalorder %s21, 0
    %p251 = por %p249, %p250
    %p252 = scmp.le.s32.totalorder 1, %s15
    %p253 = scmp.lt.s32.totalorder %s15, 3
    %p254 = pnand %p252, %p253
    %p255 = pneg %p254
    // Predicated region
    $region9: #{tpu_custom_call.1} parent=5 // pred_check
      _
    $region10: #{tpu_custom_call.1} parent=5 // pred_check_branch
      %257 = sbr.rel (%p254) target = $region12
    $region11: #{tpu_custom_call.1} parent=5 // pred_region
      %s258 = ssub.s32 %s15, 1
      // Predicated region
      $region13: #{tpu_custom_call.1} parent=11 // pred_check
        %p259 = pneg %p104
      $region14: #{tpu_custom_call.1} parent=11 // pred_check_branch
        %261 = sbr.rel (%p259) target = $region16
      $region15: #{tpu_custom_call.1} parent=11 // pred_region
        _
      $region16: #{tpu_custom_call.1} parent=11 // pred_fallthru
        _
      // Predicated region
      $region17: #{tpu_custom_call.1} parent=11 // pred_check
        %p262 = pneg %p125
      $region18: #{tpu_custom_call.1} parent=11 // pred_check_branch
        %264 = sbr.rel (%p262) target = $region20
      $region19: #{tpu_custom_call.1} parent=11 // pred_region
        _
      $region20: #{tpu_custom_call.1} parent=11 // pred_fallthru
        _
      // Predicated region
      $region21: #{tpu_custom_call.1} parent=11 // pred_check
        %p265 = pneg %p146
      $region22: #{tpu_custom_call.1} parent=11 // pred_check_branch
        %267 = sbr.rel (%p265) target = $region24
      $region23: #{tpu_custom_call.1} parent=11 // pred_region
        _
      $region24: #{tpu_custom_call.1} parent=11 // pred_fallthru
        _
      // Predicated region
      $region25: #{tpu_custom_call.1} parent=11 // pred_check
        %p268 = pneg %p167
      $region26: #{tpu_custom_call.1} parent=11 // pred_check_branch
        %270 = sbr.rel (%p268) target = $region28
      $region27: #{tpu_custom_call.1} parent=11 // pred_region
        _
      $region28: #{tpu_custom_call.1} parent=11 // pred_fallthru
        _
      // Predicated region
      $region29: #{tpu_custom_call.1} parent=11 // pred_check
        %p271 = pneg %p188
      $region30: #{tpu_custom_call.1} parent=11 // pred_check_branch
        %273 = sbr.rel (%p271) target = $region32
      $region31: #{tpu_custom_call.1} parent=11 // pred_region
        _
      $region32: #{tpu_custom_call.1} parent=11 // pred_fallthru
        _
    $region12: #{tpu_custom_call.1} parent=5 // pred_fallthru
      _
    %p274 = scmp.lt.s32.totalorder %s15, 2
    // Predicated region
    $region33: #{tpu_custom_call.1} parent=5 // pred_check
      %p275 = pneg %p274
    $region34: #{tpu_custom_call.1} parent=5 // pred_check_branch
      %277 = sbr.rel (%p275) target = $region36
    $region35: #{tpu_custom_call.1} parent=5 // pred_region
      // Predicated region
      $region37: #{tpu_custom_call.1} parent=35 // pred_check
        %p278 = pneg %p49
      $region38: #{tpu_custom_call.1} parent=35 // pred_check_branch
        %280 = sbr.rel (%p278) target = $region40
      $region39: #{tpu_custom_call.1} parent=35 // pred_region
        %s281 = smul.u32 2, %s23
        %p282 = scmp.lt.s32.totalorder %s22, 1
        %s283 = scalar_select %p282, %s22, 1
        %p284 = scmp.lt.s32.totalorder %s281, 1
        %s285 = scalar_select %p284, %s281, 1
        %s286 = smul.addr %s283, 2
        %s287 = sadd.s32 %s285, %s286
        %s288 = smul.addr %s287, 4
        %s289 = scalar_lea.vmem %s0, %s288
        %s290 = smul.u32 2, %s23
      $region40: #{tpu_custom_call.1} parent=35 // pred_fallthru
        _
      // Predicated region
      $region41: #{tpu_custom_call.1} parent=35 // pred_check
        %p291 = pneg %p77
      $region42: #{tpu_custom_call.1} parent=35 // pred_check_branch
        %293 = sbr.rel (%p291) target = $region44
      $region43: #{tpu_custom_call.1} parent=35 // pred_region
        %s294 = smul.u32 2, %s23
        %p295 = scmp.lt.s32.totalorder %s22, 1
        %s296 = scalar_select %p295, %s22, 1
        %p297 = scmp.lt.s32.totalorder %s294, 1
        %s298 = scalar_select %p297, %s294, 1
        %s299 = smul.addr %s296, 2
        %s300 = sadd.s32 %s298, %s299
        %s301 = smul.addr %s300, 4
        %s302 = scalar_lea.vmem %s1, %s301
        %s303 = smul.u32 2, %s23
      $region44: #{tpu_custom_call.1} parent=35 // pred_fallthru
        _
    $region36: #{tpu_custom_call.1} parent=5 // pred_fallthru
      _
    %p304 = scmp.le.s32.totalorder 1, %s15
    %p305 = scmp.lt.s32.totalorder %s15, 3
    %p306 = pnand %p304, %p305
    %p307 = pneg %p306
    // Predicated region
    $region45: #{tpu_custom_call.1} parent=5 // pred_check
      _
    $region46: #{tpu_custom_call.1} parent=5 // pred_check_branch
      %309 = sbr.rel (%p306) target = $region48
    $region47: #{tpu_custom_call.1} parent=5 // pred_region
      %s310 = ssub.s32 %s15, 1
      %s311 = smul.u32 2, %s25
      %p312 = scmp.lt.s32.totalorder %s24, 1
      %s313 = scalar_select %p312, %s24, 1
      %p314 = scmp.lt.s32.totalorder %s311, 1
      %s315 = scalar_select %p314, %s311, 1
      %s316 = smul.addr %s313, 2
      %s317 = sadd.s32 %s315, %s316
      %s318 = smul.addr %s317, 4
      %s319 = scalar_lea.vmem %s0, %s318
      %p320 = pneg %p55
      %p321 = pneg %p52
      %s322 = smul.u32 2, %s25
      %p323 = scmp.lt.s32.totalorder %s24, 1
      %s324 = scalar_select %p323, %s24, 1
      %p325 = scmp.lt.s32.totalorder %s322, 1
      %s326 = scalar_select %p325, %s322, 1
      %s327 = smul.addr %s324, 2
      %s328 = sadd.s32 %s326, %s327
      %s329 = smul.addr %s328, 4
      %s330 = scalar_lea.vmem %s1, %s329
      %p331 = pneg %p83
      %p332 = pneg %p80
      %p333 = pneg %p104
      %p334 = pneg %p101
      %p335 = pneg %p125
      %p336 = pneg %p122
      %p337 = pneg %p146
      %p338 = pneg %p143
      %p339 = pneg %p167
      %p340 = pneg %p164
      %p341 = pneg %p188
      %p342 = pneg %p185
      %p343 = pneg %p216
      %p344 = pneg %p213
      %s345 = smul.u32 2, %s25
      %p346 = scmp.lt.s32.totalorder %s24, 1
      %s347 = scalar_select %p346, %s24, 1
      %p348 = scmp.lt.s32.totalorder %s345, 1
      %s349 = scalar_select %p348, %s345, 1
      %s350 = smul.addr %s347, 2
      %s351 = sadd.s32 %s349, %s350
      %s352 = smul.addr %s351, 8
      %s353 = scalar_lea.vmem %s7, %s352
      %p354 = pneg %p244
      %p355 = pneg %p241
      %s356 = smul.u32 2, %s25
      %p357 = scmp.lt.s32.totalorder %s24, 1
      %s358 = scalar_select %p357, %s24, 1
      %p359 = scmp.lt.s32.totalorder %s356, 1
      %s360 = scalar_select %p359, %s356, 1
      %s361 = smul.addr %s358, 2
      %s362 = sadd.s32 %s360, %s361
      %s363 = smul.addr %s362, 4
      %s364 = scalar_lea.vmem %s8, %s363
      %s365 = smul.u32 2, %s25
      %p366 = scmp.lt.s32.totalorder %s24, 1
      %s367 = scalar_select %p366, %s24, 1
      %p368 = scmp.lt.s32.totalorder %s365, 1
      %s369 = scalar_select %p368, %s365, 1
      %s370 = smul.addr %s367, 2
      %s371 = sadd.s32 %s369, %s370
      %s372 = smul.addr %s371, 4
      %s373 = scalar_lea.vmem %s0, %s372
      %s374 = smul.u32 2, %s25
      %s375 = smul.u32 2, %s25
      %p376 = scmp.lt.s32.totalorder %s24, 1
      %s377 = scalar_select %p376, %s24, 1
      %p378 = scmp.lt.s32.totalorder %s375, 1
      %s379 = scalar_select %p378, %s375, 1
      %s380 = smul.addr %s377, 2
      %s381 = sadd.s32 %s379, %s380
      %s382 = smul.addr %s381, 4
      %s383 = scalar_lea.vmem %s1, %s382
      %s384 = smul.u32 2, %s25
      %s385 = smul.u32 2, %s25
      %p386 = scmp.lt.s32.totalorder %s24, 1
      %s387 = scalar_select %p386, %s24, 1
      %p388 = scmp.lt.s32.totalorder %s385, 1
      %s389 = scalar_select %p388, %s385, 1
      %s390 = smul.addr %s387, 2
      %s391 = sadd.s32 %s389, %s390
      %s392 = smul.addr %s391, 8
      %s393 = scalar_lea.vmem %s7, %s392
      %s394 = smul.u32 2, %s25
      %s395 = smul.u32 2, %s25
      %p396 = scmp.lt.s32.totalorder %s24, 1
      %s397 = scalar_select %p396, %s24, 1
      %p398 = scmp.lt.s32.totalorder %s395, 1
      %s399 = scalar_select %p398, %s395, 1
      %s400 = smul.addr %s397, 2
      %s401 = sadd.s32 %s399, %s400
      %s402 = smul.addr %s401, 4
      %s403 = scalar_lea.vmem %s8, %s402
      %s404 = smul.u32 2, %s25
      %v405 = vld [vmem:[%s373] sm:$0xff]
      %v406 = vld [vmem:[%s383] sm:$0x77]
      %v408 = vcombine.high %v405, %v405
      %410 = vst [vmem:[%s393] sm:$0xf] %v405
      %411 = vst [vmem:[%s393 + $0x8] sm:$0xf] %v408
      %v413 = vcombine.low %v406, %v406
      %415 = vst [vmem:[%s393] sm:$0x70] %v413
      %416 = vst [vmem:[%s393 + $0x8] sm:$0x70] %v406
      %v417 = vld [vmem:[%s2] sm:$0xff]
      %v418 = vld [vmem:[%s2 + $0x8] sm:$0xff]
      %v419 = vld [vmem:[%s2 + $0x10] sm:$0xff]
      %v420 = vld [vmem:[%s2 + $0x18] sm:$0xff]
      %v421 = vld [vmem:[%s3] sm:$0xff]
      %v422 = vld [vmem:[%s3 + $0x8] sm:$0xff]
      %v423 = vld [vmem:[%s3 + $0x10] sm:$0xff]
      %v424 = vld [vmem:[%s3 + $0x18] sm:$0xff]
      %v425 = vcombine.high %v406, %v406
      %vm426 = vcmask 23552
      %v428 = vsel %vm426, %v421, 0
      %v431 = vsel %vm426, %v422, 0
      %v434 = vsel %vm426, %v423, 0
      %v437 = vsel %vm426, %v424, 0
      %vm439 = vcmask 1042432
      %v440 = vsel %vm439, %v406, 0
      %v442 = vsel %vm439, %v425, 0
      %444 = vmatprep.subr.mxu0 0.0
      %445 = vmatpush1.msra.mxu0 0.0
      %446 = vmatprep.subr.mxu0 0.0
      %447 = vmatpush1.msra.mxu0 0.0
      %448 = vmatprep.subr.mxu0 0.0
      %449 = vmatpush1.msra.mxu0 0.0
      %450 = vmatprep.subr.mxu0 0.0
      %451 = vmatpush1.msra.mxu0 0.0
      %452 = vmatprep.subr.mxu0 0.0
      %453 = vmatpush1.msra.mxu0 0.0
      %454 = vmatprep.subr.mxu0 0.0
      %455 = vmatpush1.msra.mxu0 0.0
      %456 = vmatprep.subr.mxu0 0.0
      %457 = vmatpush1.msra.mxu0 0.0
      %458 = vmatprep.subr.mxu0 0.0
      %459 = vmatpush1.msra.mxu0 0.0
      %460 = vmatprep.subr.mxu0 0.0
      %461 = vmatpush1.msra.mxu0 0.0
      %462 = vmatprep.subr.mxu0 0.0
      %463 = vmatpush1.msra.mxu0 0.0
      %464 = vmatprep.subr.mxu0 0.0
      %465 = vmatpush1.msra.mxu0 0.0
      %466 = vmatprep.subr.mxu0 0.0
      %467 = vmatpush1.msra.mxu0 0.0
      %468 = vmatprep.subr.mxu0 0.0
      %469 = vmatpush1.msra.mxu0 0.0
      %470 = vmatprep.subr.mxu0 0.0
      %471 = vmatpush1.msra.mxu0 0.0
      %472 = vmatprep.subr.mxu0 0.0
      %473 = vmatpush1.msra.mxu0 0.0
      %474 = vmatprep.subr.mxu0 %v442
      %475 = vmatpush1.msra.mxu0 %v440
      %476 = vmatprep.subr.mxu0 0.0
      %477 = vmatpush2.msra.mxu0 0.0
      %478 = vmatprep.subr.mxu0 0.0
      %479 = vmatpush2.msra.mxu0 0.0
      %480 = vmatprep.subr.mxu0 0.0
      %481 = vmatpush2.msra.mxu0 0.0
      %482 = vmatprep.subr.mxu0 0.0
      %483 = vmatpush2.msra.mxu0 0.0
      %484 = vmatprep.subr.mxu0 0.0
      %485 = vmatpush2.msra.mxu0 0.0
      %486 = vmatprep.subr.mxu0 0.0
      %487 = vmatpush2.msra.mxu0 0.0
      %488 = vmatprep.subr.mxu0 0.0
      %489 = vmatpush2.msra.mxu0 0.0
      %490 = vmatprep.subr.mxu0 0.0
      %491 = vmatpush2.msra.mxu0 0.0
      %492 = vmatprep.subr.mxu0 0.0
      %493 = vmatpush2.msra.mxu0 0.0
      %494 = vmatprep.subr.mxu0 0.0
      %495 = vmatpush2.msra.mxu0 0.0
      %496 = vmatprep.subr.mxu0 0.0
      %497 = vmatpush2.msra.mxu0 0.0
      %498 = vmatprep.subr.mxu0 0.0
      %499 = vmatpush2.msra.mxu0 0.0
      %500 = vmatprep.subr.mxu0 0.0
      %501 = vmatpush2.msra.mxu0 0.0
      %502 = vmatprep.subr.mxu0 0.0
      %503 = vmatpush2.msra.mxu0 0.0
      %504 = vmatprep.subr.mxu0 0.0
      %505 = vmatpush2.msra.mxu0 0.0
      %506 = vmatprep.subr.mxu0 0.0
      %507 = vmatpush2.msra.mxu0 0.0
      %508 = vmatprep.mubr.f32.mxu0 0.0
      %509 = vmatmul.mubr.f32.gmra.mxu0 %v428
      %v510 = vpop.f32.mrf.mxu0
      %v511 = vadd.f32 0.0, %v510
      %v512 = vpop.f32.mrf.mxu0
      %v513 = vadd.f32 0.0, %v512
      %514 = vmatprep.mubr.f32.mxu0 0.0
      %515 = vmatmul.mubr.f32.gmra.mxu0 %v431
      %v516 = vpop.f32.mrf.mxu0
      %v517 = vadd.f32 0.0, %v516
      %v518 = vpop.f32.mrf.mxu0
      %v519 = vadd.f32 0.0, %v518
      %520 = vmatprep.mubr.f32.mxu0 0.0
      %521 = vmatmul.mubr.f32.gmra.mxu0 %v434
      %v522 = vpop.f32.mrf.mxu0
      %v523 = vadd.f32 0.0, %v522
      %v524 = vpop.f32.mrf.mxu0
      %v525 = vadd.f32 0.0, %v524
      %526 = vmatprep.mubr.f32.mxu0 0.0
      %527 = vmatmul.mubr.f32.gmra.mxu0 %v437
      %v528 = vpop.f32.mrf.mxu0
      %v529 = vadd.f32 0.0, %v528
      %v530 = vpop.f32.mrf.mxu0
      %v531 = vadd.f32 0.0, %v530
      %532 = vdwg.mxu0
      %vm533 = vcmask 31744
      %v535 = vsel %vm533, %v417, 0
      %v538 = vsel %vm533, %v418, 0
      %v541 = vsel %vm533, %v419, 0
      %v544 = vsel %vm533, %v420, 0
      %vm546 = vcmask 1043456
      %v547 = vsel %vm546, %v405, 0
      %v549 = vsel %vm546, %v408, 0
      %551 = vmatprep.subr.mxu0 0.0
      %552 = vmatpush1.msra.mxu0 0.0
      %553 = vmatprep.subr.mxu0 0.0
      %554 = vmatpush1.msra.mxu0 0.0
      %555 = vmatprep.subr.mxu0 0.0
      %556 = vmatpush1.msra.mxu0 0.0
      %557 = vmatprep.subr.mxu0 0.0
      %558 = vmatpush1.msra.mxu0 0.0
      %559 = vmatprep.subr.mxu0 0.0
      %560 = vmatpush1.msra.mxu0 0.0
      %561 = vmatprep.subr.mxu0 0.0
      %562 = vmatpush1.msra.mxu0 0.0
      %563 = vmatprep.subr.mxu0 0.0
      %564 = vmatpush1.msra.mxu0 0.0
      %565 = vmatprep.subr.mxu0 0.0
      %566 = vmatpush1.msra.mxu0 0.0
      %567 = vmatprep.subr.mxu0 0.0
      %568 = vmatpush1.msra.mxu0 0.0
      %569 = vmatprep.subr.mxu0 0.0
      %570 = vmatpush1.msra.mxu0 0.0
      %571 = vmatprep.subr.mxu0 0.0
      %572 = vmatpush1.msra.mxu0 0.0
      %573 = vmatprep.subr.mxu0 0.0
      %574 = vmatpush1.msra.mxu0 0.0
      %575 = vmatprep.subr.mxu0 0.0
      %576 = vmatpush1.msra.mxu0 0.0
      %577 = vmatprep.subr.mxu0 0.0
      %578 = vmatpush1.msra.mxu0 0.0
      %579 = vmatprep.subr.mxu0 0.0
      %580 = vmatpush1.msra.mxu0 0.0
      %581 = vmatprep.subr.mxu0 %v549
      %582 = vmatpush1.msra.mxu0 %v547
      %583 = vmatprep.subr.mxu0 0.0
      %584 = vmatpush2.msra.mxu0 0.0
      %585 = vmatprep.subr.mxu0 0.0
      %586 = vmatpush2.msra.mxu0 0.0
      %587 = vmatprep.subr.mxu0 0.0
      %588 = vmatpush2.msra.mxu0 0.0
      %589 = vmatprep.subr.mxu0 0.0
      %590 = vmatpush2.msra.mxu0 0.0
      %591 = vmatprep.subr.mxu0 0.0
      %592 = vmatpush2.msra.mxu0 0.0
      %593 = vmatprep.subr.mxu0 0.0
      %594 = vmatpush2.msra.mxu0 0.0
      %595 = vmatprep.subr.mxu0 0.0
      %596 = vmatpush2.msra.mxu0 0.0
      %597 = vmatprep.subr.mxu0 0.0
      %598 = vmatpush2.msra.mxu0 0.0
      %599 = vmatprep.subr.mxu0 0.0
      %600 = vmatpush2.msra.mxu0 0.0
      %601 = vmatprep.subr.mxu0 0.0
      %602 = vmatpush2.msra.mxu0 0.0
      %603 = vmatprep.subr.mxu0 0.0
      %604 = vmatpush2.msra.mxu0 0.0
      %605 = vmatprep.subr.mxu0 0.0
      %606 = vmatpush2.msra.mxu0 0.0
      %607 = vmatprep.subr.mxu0 0.0
      %608 = vmatpush2.msra.mxu0 0.0
      %609 = vmatprep.subr.mxu0 0.0
      %610 = vmatpush2.msra.mxu0 0.0
      %611 = vmatprep.subr.mxu0 0.0
      %612 = vmatpush2.msra.mxu0 0.0
      %613 = vmatprep.subr.mxu0 0.0
      %614 = vmatpush2.msra.mxu0 0.0
      %615 = vmatprep.mubr.f32.mxu0 0.0
      %616 = vmatmul.mubr.f32.gmra.mxu0 %v535
      %v617 = vpop.f32.mrf.mxu0
      %v618 = vadd.f32 %v511, %v617
      %v619 = vpop.f32.mrf.mxu0
      %v620 = vadd.f32 %v513, %v619
      %621 = vmatprep.mubr.f32.mxu0 0.0
      %622 = vmatmul.mubr.f32.gmra.mxu0 %v538
      %v623 = vpop.f32.mrf.mxu0
      %v624 = vadd.f32 %v517, %v623
      %v625 = vpop.f32.mrf.mxu0
      %v626 = vadd.f32 %v519, %v625
      %627 = vmatprep.mubr.f32.mxu0 0.0
      %628 = vmatmul.mubr.f32.gmra.mxu0 %v541
      %v629 = vpop.f32.mrf.mxu0
      %v630 = vadd.f32 %v523, %v629
      %v631 = vpop.f32.mrf.mxu0
      %v632 = vadd.f32 %v525, %v631
      %633 = vmatprep.mubr.f32.mxu0 0.0
      %634 = vmatmul.mubr.f32.gmra.mxu0 %v544
      %v635 = vpop.f32.mrf.mxu0
      %v636 = vadd.f32 %v529, %v635
      %v637 = vpop.f32.mrf.mxu0
      %v638 = vadd.f32 %v531, %v637
      %639 = vdwg.mxu0
      %v640 = vld [vmem:[%s4] sm:$0xff]
      %v641 = vld [vmem:[%s4 + $0x8] sm:$0xff]
      %v642 = vld [vmem:[%s4 + $0x10] sm:$0xff]
      %v643 = vld [vmem:[%s4 + $0x18] sm:$0xff]
      %645 = vset.pattern.permute.xlu0 0
      %646 = vperm.xlu0 %645, %v640
      %v647 = vpop.permute.xlu0 %646
      %650 = vset.pattern.permute.xlu0 0
      %651 = vperm.xlu0 %650, %v641
      %v652 = vpop.permute.xlu0 %651
      %655 = vset.pattern.permute.xlu0 0
      %656 = vperm.xlu0 %655, %v642
      %v657 = vpop.permute.xlu0 %656
      %660 = vset.pattern.permute.xlu0 0
      %661 = vperm.xlu0 %660, %v643
      %v662 = vpop.permute.xlu0 %661
      %v664 = vadd.f32 %v618, %v647
      %v665 = vadd.f32 %v620, %v647
      %v666 = vadd.f32 %v624, %v652
      %v667 = vadd.f32 %v626, %v652
      %v668 = vadd.f32 %v630, %v657
      %v669 = vadd.f32 %v632, %v657
      %v670 = vadd.f32 %v636, %v662
      %v671 = vadd.f32 %v638, %v662
      %vm672 = vcmp.gt.f32.partialorder %v664, 0.0
      %vm673 = vcmp.gt.f32.partialorder %v665, 0.0
      %vm674 = vcmp.gt.f32.partialorder %v666, 0.0
      %vm675 = vcmp.gt.f32.partialorder %v667, 0.0
      %vm676 = vcmp.gt.f32.partialorder %v668, 0.0
      %vm677 = vcmp.gt.f32.partialorder %v669, 0.0
      %vm678 = vcmp.gt.f32.partialorder %v670, 0.0
      %vm679 = vcmp.gt.f32.partialorder %v671, 0.0
      %v680 = vmul.f32 %v664, 0.2
      %v681 = vmul.f32 %v665, 0.2
      %v682 = vmul.f32 %v666, 0.2
      %v683 = vmul.f32 %v667, 0.2
      %v684 = vmul.f32 %v668, 0.2
      %v685 = vmul.f32 %v669, 0.2
      %v686 = vmul.f32 %v670, 0.2
      %v687 = vmul.f32 %v671, 0.2
      %v688 = vsel %vm672, %v664, %v680
      %v689 = vsel %vm673, %v665, %v681
      %v690 = vsel %vm674, %v666, %v682
      %v691 = vsel %vm675, %v667, %v683
      %v692 = vsel %vm676, %v668, %v684
      %v693 = vsel %vm677, %v669, %v685
      %v694 = vsel %vm678, %v670, %v686
      %v695 = vsel %vm679, %v671, %v687
      %v696 = vld [vmem:[%s5] sm:$0x7]
      %v697 = vld [vmem:[%s6] sm:$0x7]
      %699 = vset.pattern.permute.xlu0 0
      %700 = vperm.xlu0 %699, %v697
      %v701 = vpop.permute.xlu0 %700
      %vm703 = vcmask 261120
      %v705 = vsel %vm703, %v696, 0
      %707 = vmatprep.subr.mxu0 0.0
      %708 = vmatpush1.msra.mxu0 0.0
      %709 = vmatprep.subr.mxu0 0.0
      %710 = vmatpush1.msra.mxu0 0.0
      %711 = vmatprep.subr.mxu0 0.0
      %712 = vmatpush1.msra.mxu0 0.0
      %713 = vmatprep.subr.mxu0 0.0
      %714 = vmatpush1.msra.mxu0 0.0
      %715 = vmatprep.subr.mxu0 0.0
      %716 = vmatpush1.msra.mxu0 0.0
      %717 = vmatprep.subr.mxu0 0.0
      %718 = vmatpush1.msra.mxu0 0.0
      %719 = vmatprep.subr.mxu0 0.0
      %720 = vmatpush1.msra.mxu0 0.0
      %721 = vmatprep.subr.mxu0 0.0
      %722 = vmatpush1.msra.mxu0 0.0
      %723 = vmatprep.subr.mxu0 0.0
      %724 = vmatpush1.msra.mxu0 0.0
      %725 = vmatprep.subr.mxu0 0.0
      %726 = vmatpush1.msra.mxu0 0.0
      %727 = vmatprep.subr.mxu0 0.0
      %728 = vmatpush1.msra.mxu0 0.0
      %729 = vmatprep.subr.mxu0 0.0
      %730 = vmatpush1.msra.mxu0 0.0
      %731 = vmatprep.subr.mxu0 %v695
      %732 = vmatpush1.msra.mxu0 %v694
      %733 = vmatprep.subr.mxu0 %v693
      %734 = vmatpush1.msra.mxu0 %v692
      %735 = vmatprep.subr.mxu0 %v691
      %736 = vmatpush1.msra.mxu0 %v690
      %737 = vmatprep.subr.mxu0 %v689
      %738 = vmatpush1.msra.mxu0 %v688
      %739 = vmatprep.subr.mxu0 0.0
      %740 = vmatpush2.msra.mxu0 0.0
      %741 = vmatprep.subr.mxu0 0.0
      %742 = vmatpush2.msra.mxu0 0.0
      %743 = vmatprep.subr.mxu0 0.0
      %744 = vmatpush2.msra.mxu0 0.0
      %745 = vmatprep.subr.mxu0 0.0
      %746 = vmatpush2.msra.mxu0 0.0
      %747 = vmatprep.subr.mxu0 0.0
      %748 = vmatpush2.msra.mxu0 0.0
      %749 = vmatprep.subr.mxu0 0.0
      %750 = vmatpush2.msra.mxu0 0.0
      %751 = vmatprep.subr.mxu0 0.0
      %752 = vmatpush2.msra.mxu0 0.0
      %753 = vmatprep.subr.mxu0 0.0
      %754 = vmatpush2.msra.mxu0 0.0
      %755 = vmatprep.subr.mxu0 0.0
      %756 = vmatpush2.msra.mxu0 0.0
      %757 = vmatprep.subr.mxu0 0.0
      %758 = vmatpush2.msra.mxu0 0.0
      %759 = vmatprep.subr.mxu0 0.0
      %760 = vmatpush2.msra.mxu0 0.0
      %761 = vmatprep.subr.mxu0 0.0
      %762 = vmatpush2.msra.mxu0 0.0
      %763 = vmatprep.subr.mxu0 0.0
      %764 = vmatpush2.msra.mxu0 0.0
      %765 = vmatprep.subr.mxu0 0.0
      %766 = vmatpush2.msra.mxu0 0.0
      %767 = vmatprep.subr.mxu0 0.0
      %768 = vmatpush2.msra.mxu0 0.0
      %769 = vmatprep.subr.mxu0 0.0
      %770 = vmatpush2.msra.mxu0 0.0
      %771 = vmatprep.mubr.f32.mxu0 0.0
      %772 = vmatmul.mubr.f32.gmra.mxu0 %v705
      %v773 = vpop.f32.mrf.mxu0
      %v774 = vadd.f32 %v701, %v773
      %v775 = vpop.f32.mrf.mxu0
      %v776 = vadd.f32 %v701, %v775
      %777 = vdwg.mxu0
      %v778 = vtanh.pop %v774
      %v779 = vtanh.pop %v776
      %v782 = vcombine.low %v778, %v779
      %784 = vst [vmem:[%s403] sm:$0x77] %v782
      %s785 = smul.u32 2, %s25
      %p786 = scmp.lt.s32.totalorder %s24, 1
      %s787 = scalar_select %p786, %s24, 1
      %p788 = scmp.lt.s32.totalorder %s785, 1
      %s789 = scalar_select %p788, %s785, 1
      %s790 = smul.addr %s787, 2
      %s791 = sadd.s32 %s789, %s790
      %s792 = smul.addr %s791, 8
      %s793 = scalar_lea.vmem %s7, %s792
      %s794 = smul.u32 2, %s25
      %p795 = scmp.lt.s32.totalorder %s24, 1
      %s796 = scalar_select %p795, %s24, 1
      %p797 = scmp.lt.s32.totalorder %s794, 1
      %s798 = scalar_select %p797, %s794, 1
      %s799 = smul.addr %s796, 2
      %s800 = sadd.s32 %s798, %s799
      %s801 = smul.addr %s800, 4
      %s802 = scalar_lea.vmem %s8, %s801
      // Predicated region
      $region49: #{tpu_custom_call.1} parent=47 // pred_check
        %p803 = pneg %p213
      $region50: #{tpu_custom_call.1} parent=47 // pred_check_branch
        %805 = sbr.rel (%p803) target = $region52
      $region51: #{tpu_custom_call.1} parent=47 // pred_region
        %s806 = smul.u32 2, %s25
      $region52: #{tpu_custom_call.1} parent=47 // pred_fallthru
        _
      // Predicated region
      $region53: #{tpu_custom_call.1} parent=47 // pred_check
        %p807 = pneg %p241
      $region54: #{tpu_custom_call.1} parent=47 // pred_check_branch
        %809 = sbr.rel (%p807) target = $region56
      $region55: #{tpu_custom_call.1} parent=47 // pred_region
        %s810 = smul.u32 2, %s25
      $region56: #{tpu_custom_call.1} parent=47 // pred_fallthru
        _
    $region48: #{tpu_custom_call.1} parent=5 // pred_fallthru
      _
    %p811 = scmp.le.s32.totalorder 2, %s15
    // Predicated region
    $region57: #{tpu_custom_call.1} parent=5 // pred_check
      %p812 = pneg %p811
    $region58: #{tpu_custom_call.1} parent=5 // pred_check_branch
      %814 = sbr.rel (%p812) target = $region60
    $region59: #{tpu_custom_call.1} parent=5 // pred_region
      %s815 = ssub.s32 %s15, 2
      // Predicated region
      $region61: #{tpu_custom_call.1} parent=59 // pred_check
        %p816 = pneg %p219
      $region62: #{tpu_custom_call.1} parent=59 // pred_check_branch
        %818 = sbr.rel (%p816) target = $region64
      $region63: #{tpu_custom_call.1} parent=59 // pred_region
        %s819 = smul.u32 2, %s27
        %p820 = scmp.lt.s32.totalorder %s26, 1
        %s821 = scalar_select %p820, %s26, 1
        %p822 = scmp.lt.s32.totalorder %s819, 1
        %s823 = scalar_select %p822, %s819, 1
        %s824 = smul.addr %s821, 2
        %s825 = sadd.s32 %s823, %s824
        %s826 = smul.addr %s825, 8
        %s827 = scalar_lea.vmem %s7, %s826
      $region64: #{tpu_custom_call.1} parent=59 // pred_fallthru
        _
      // Predicated region
      $region65: #{tpu_custom_call.1} parent=59 // pred_check
        %p828 = pneg %p247
      $region66: #{tpu_custom_call.1} parent=59 // pred_check_branch
        %830 = sbr.rel (%p828) target = $region68
      $region67: #{tpu_custom_call.1} parent=59 // pred_region
        %s831 = smul.u32 2, %s27
        %p832 = scmp.lt.s32.totalorder %s26, 1
        %s833 = scalar_select %p832, %s26, 1
        %p834 = scmp.lt.s32.totalorder %s831, 1
        %s835 = scalar_select %p834, %s831, 1
        %s836 = smul.addr %s833, 2
        %s837 = sadd.s32 %s835, %s836
        %s838 = smul.addr %s837, 4
        %s839 = scalar_lea.vmem %s8, %s838
      $region68: #{tpu_custom_call.1} parent=59 // pred_fallthru
        _
    $region60: #{tpu_custom_call.1} parent=5 // pred_fallthru
      _
  $region6: #{tpu_custom_call.1} parent=0 // loop_footer
    %s19 = sadd.s32 1, %s15
  $region7: #{tpu_custom_call.1} parent=0 // loop_footer_branch
    %14 = sbr.rel target = $region3
  $region8: #{tpu_custom_call.1} parent=0 // loop_exit
    _

</llo_original>
